<compile_context>
chip_gen: v7x
topology: tpu7x:2x2x1
jax: 0.10.0
libtpu: 0.0.40
codegen_flags: <defaults>
</compile_context>

<pallas_src>
import functools
from typing import Dict, Optional

import jax
import jax.numpy as jnp
from jax.experimental import pallas as pl
from jax.experimental.pallas import tpu as pltpu


# ----------------------------------------------------------------------------
# Constants (stand-in for TorchConstants; deterministic, defined in-script)
# ----------------------------------------------------------------------------
class JaxConstants:
    """Minimal const_lib equivalent (units: e, Angstrom, kcal/mol)."""

    def __init__(self, units_dict: Optional[Dict] = None):
        # Coulomb constant in kcal/mol * Angstrom / e^2
        self.dielectric = 332.0637

    # TODO(synk): full TorchConstants unit-conversion table not reproduced here.


# ----------------------------------------------------------------------------
# Kernel configuration
# ----------------------------------------------------------------------------
LANES = 128
SUBLANES = 8
MAX_BLOCK_ROWS = 4096                 # 4096 x 128 f32 = 2 MiB per input block
VMEM_LIMIT_BYTES = 40 * 1024 * 1024   # 4 inputs x 2 buffers x 2 MiB = 16 MiB + headroom


def _cdiv(a: int, b: int) -> int:
    return -(-a // b)


def _round_up(x: int, m: int) -> int:
    return _cdiv(x, m) * m


@functools.lru_cache(maxsize=None)
def _num_tensorcores() -> int:
    """2 on dual-TensorCore chips (v7x-class), 1 on v5e/v6e. Safe fallback: 1."""
    try:
        info = pltpu.get_tpu_info()
        for attr in ("num_tensorcores", "tensorcore_count", "num_cores", "core_count"):
            v = getattr(info, attr, None)
            if isinstance(v, int) and v >= 1:
                return min(int(v), 2)
    except Exception:
        pass
    try:
        if "v7" in jax.devices()[0].device_kind.lower():
            return 2
    except Exception:
        pass
    return 1


# ----------------------------------------------------------------------------
# Pallas kernel: per-pair energy + streaming reduction
# ----------------------------------------------------------------------------
def _pair_energy_kernel(qi_ref, qj_ref, ds_ref, sc_ref, out_ref, acc_ref, *, valid_rows):
    shard = pl.program_id(0)
    step = pl.program_id(1)
    block_rows = qi_ref.shape[0]

    # zero this shard's small accumulator at the start of its reduction sweep
    @pl.when(step == 0)
    def _():
        acc_ref[...] = jnp.zeros_like(acc_ref)

    # hot loop: purely elementwise VPU work; exact f32 division (free at HBM roofline)
    e = qi_ref[...] * qj_ref[...] * sc_ref[...] / ds_ref[...]

    # mask the ragged tail in-kernel: rows past the valid row count come from a
    # partial last block (or an over-provisioned shard step) and hold garbage.
    row0 = (shard * pl.num_programs(1) + step) * block_rows
    grow = row0 + jax.lax.broadcasted_iota(jnp.int32, e.shape, 0)
    e = jnp.where(grow < valid_rows, e, 0.0)

    # fold the block into an (8,128) accumulator with pure vreg-wise VALU adds
    # (no per-step cross-lane XLU work, no block-sized scratch)
    acc_ref[...] += e.reshape(-1, SUBLANES, LANES).sum(axis=0)

    # one cross-lane reduce per shard, only on the last step; broadcast into this
    # shard's lane-dense (8,128) output block (unmasked stores).
    @pl.when(step == pl.num_programs(1) - 1)
    def _():
        out_ref[...] = jnp.full(out_ref.shape, jnp.sum(acc_ref[...]), dtype=out_ref.dtype)


def _pair_energy_pallas(qi, qj, ds, scales):
    """qi/qj/ds/scales: flat f32 arrays of length n_pairs. Returns sum(qi*qj*scales/ds)."""
    n = int(qi.shape[0])
    if n == 0:
        return jnp.float32(0.0)

    num_tc = _num_tensorcores()

    # 2-D streaming view: rows x 128 lanes, rows a multiple of 8 so every block
    # is a valid (8,128)-tiled block.  Block rows are split across TensorCores
    # (when there are 2) and capped so 4 inputs x 2 buffers fit VMEM.
    rows = _round_up(_cdiv(n, LANES), SUBLANES)
    block_rows = min(MAX_BLOCK_ROWS, _round_up(_cdiv(rows, num_tc), SUBLANES))
    total_steps = _cdiv(rows, block_rows)
    num_shards = min(num_tc, total_steps)
    steps_per_shard = _cdiv(total_steps, num_shards)
    last_blk = total_steps - 1
    n_padded = rows * LANES

    def to2d(x, fill):
        x = x.astype(jnp.float32)
        if n != n_padded:
            # residual (< 1024 element) pad only for non-aligned n; fused with the
            # upstream gather/cast under jit.  Neutral fills + in-kernel masking.
            x = jnp.pad(x, (0, n_padded - n), constant_values=fill)
        return x.reshape(rows, LANES)

    # shard axis c picks a contiguous range of row-blocks; the block index is
    # clamped so over-provisioned steps re-read a valid block (masked to zero).
    in_spec = pl.BlockSpec(
        (block_rows, LANES),
        lambda c, i: (jnp.minimum(c * steps_per_shard + i, last_blk), 0),
    )
    out_spec = pl.BlockSpec((SUBLANES, LANES), lambda c, i: (c, 0))

    kernel = functools.partial(_pair_energy_kernel, valid_rows=rows)

    out = pl.pallas_call(
        kernel,
        out_shape=jax.ShapeDtypeStruct((num_shards * SUBLANES, LANES), jnp.float32),
        grid_spec=pltpu.PrefetchScalarGridSpec(
            num_scalar_prefetch=0,
            grid=(num_shards, steps_per_shard),
            in_specs=[in_spec, in_spec, in_spec, in_spec],
            out_specs=out_spec,
            scratch_shapes=[pltpu.VMEM((SUBLANES, LANES), jnp.float32)],
        ),
        compiler_params=pltpu.CompilerParams(
            # shard axis across TensorCores (v7x); reduction axis stays serial
            dimension_semantics=("parallel", "arbitrary"),
            vmem_limit_bytes=VMEM_LIMIT_BYTES,
        ),
    )(to2d(qi, 0.0), to2d(qj, 0.0), to2d(ds, 1.0), to2d(scales, 0.0))

    # each shard's (8,128) block holds its partial sum broadcast; take one element
    partials = out.reshape(num_shards, SUBLANES, LANES)[:, 0, 0]
    return jnp.sum(partials)


# ----------------------------------------------------------------------------
# Jitted forward impl: gather + cast + residual pad fuse into single producers
# ----------------------------------------------------------------------------
@jax.jit
def _coulomb_energy(pairs, ds, buffer_scales, charge, dielectric):
    q = charge.astype(jnp.float32)
    # TODO(synk): move this gather into the kernel (stream `pairs`, charge table
    # resident in VMEM) to cut the qi/qj HBM round-trip for very large n_pairs.
    qi = q[pairs[:, 0]]
    qj = q[pairs[:, 1]]
    e = _pair_energy_pallas(qi, qj, ds, buffer_scales)
    return e * dielectric.astype(jnp.float32)


# ----------------------------------------------------------------------------
# Module wrapper (mirrors BaseForceModule interface)
# ----------------------------------------------------------------------------
class PairwiseForceModule:
    """JAX/Pallas counterpart of a concrete BaseForceModule subclass (Coulomb PES)."""

    def __init__(self, units_dict: Optional[Dict] = None):
        self.const_lib = JaxConstants(units_dict)

    def forward(
        self,
        positions: jnp.ndarray,           # (n_atoms, 3) f32
        box: Optional[jnp.ndarray],       # (3, 3) f32 or None (unused by this PES)
        pairs: jnp.ndarray,               # (n_pairs, 2) int32
        ds: jnp.ndarray,                  # (n_pairs,) f32
        buffer_scales: jnp.ndarray,       # (n_pairs,) f32, 1 if i < j else 0
        params: Dict[str, jnp.ndarray],   # {"charge": (n_atoms,) f32}
    ) -> jnp.ndarray:
        # positions/box are part of the BaseForceModule signature; this PES consumes
        # the precomputed pair distances `ds` directly.
        return _coulomb_energy(
            pairs.astype(jnp.int32),
            ds,
            buffer_scales,
            params["charge"],
            jnp.float32(self.const_lib.dielectric),
        )

    __call__ = forward


# ----------------------------------------------------------------------------
# Reference (plain JAX) for sanity
# ----------------------------------------------------------------------------
def _reference_energy(pairs, ds, buffer_scales, charges, dielectric):
    qi = charges[pairs[:, 0]]
    qj = charges[pairs[:, 1]]
    return dielectric * jnp.sum(qi * qj / ds * buffer_scales)


if __name__ == "__main__":
    key = jax.random.PRNGKey(0)
    k_pos, k_q, k_q2, k_idx, k_ds = jax.random.split(key, 5)

    module = PairwiseForceModule()
    diel = module.const_lib.dielectric

    # --- case 1: all-pairs system, ragged pair count (496, not lane-aligned) ---
    n_atoms = 32
    positions = jax.random.uniform(k_pos, (n_atoms, 3), jnp.float32, 1.0, 9.0)
    box = jnp.eye(3, dtype=jnp.float32) * 10.0
    charges = jax.random.normal(k_q, (n_atoms,), jnp.float32) * 0.5

    ii, jj = jnp.triu_indices(n_atoms, k=1)
    pairs = jnp.stack([ii, jj], axis=-1).astype(jnp.int32)          # (496, 2)
    disp = positions[pairs[:, 0]] - positions[pairs[:, 1]]
    ds = jnp.sqrt(jnp.sum(disp * disp, axis=-1))                    # (496,)
    buffer_scales = jnp.ones((pairs.shape[0],), jnp.float32)        # i < j -> 1

    e1 = jax.block_until_ready(
        module.forward(positions, box, pairs, ds, buffer_scales, {"charge": charges})
    )
    r1 = _reference_energy(pairs, ds, buffer_scales, charges, diel)
    mag1 = float(
        diel * jnp.sum(jnp.abs(charges[pairs[:, 0]] * charges[pairs[:, 1]] / ds * buffer_scales))
    )
    assert abs(float(e1) - float(r1)) <= 1e-5 * mag1 + 1e-3, (e1, r1)

    # --- case 2: lane-aligned pair count (2048), random pairs, box=None ---
    n_atoms2 = 64
    charges2 = jax.random.normal(k_q2, (n_atoms2,), jnp.float32) * 0.3
    pairs2 = jax.random.randint(k_idx, (2048, 2), 0, n_atoms2, dtype=jnp.int32)
    ds2 = jax.random.uniform(k_ds, (2048,), jnp.float32, 1.0, 8.0)
    scales2 = (pairs2[:, 0] < pairs2[:, 1]).astype(jnp.float32)
    positions2 = jnp.zeros((n_atoms2, 3), jnp.float32)

    e2 = jax.block_until_ready(
        module.forward(positions2, None, pairs2, ds2, scales2, {"charge": charges2})
    )
    r2 = _reference_energy(pairs2, ds2, scales2, charges2, diel)
    mag2 = float(
        diel * jnp.sum(jnp.abs(charges2[pairs2[:, 0]] * charges2[pairs2[:, 1]] / ds2 * scales2)) + 1.0
    )
    assert abs(float(e2) - float(r2)) <= 1e-5 * mag2 + 1e-3, (e2, r2)

    print("KERNEL_OK")
</pallas_src>

<mosaic_0001>
module attributes {stable_mosaic.version = 11 : i64} {
  func.func @_pair_energy_kernel(%arg0: i32, %arg1: i32, %arg2: memref<8x128xf32, #tpu.memory_space<vmem>>, %arg3: memref<8x128xf32, #tpu.memory_space<vmem>>, %arg4: memref<8x128xf32, #tpu.memory_space<vmem>>, %arg5: memref<8x128xf32, #tpu.memory_space<vmem>>, %arg6: memref<8x128xf32, #tpu.memory_space<vmem>>, %arg7: memref<8x128xf32, #tpu.memory_space<vmem>>) attributes {dimension_semantics = [#tpu.dimension_semantics<parallel>, #tpu.dimension_semantics<arbitrary>], iteration_bounds = array<i64: 1, 1>, scalar_prefetch = 0 : i64, scratch_operands = 1 : i64, tpu.core_type = #tpu.core_type<tc>, window_params = [{transform_indices = @transform_0, window_bounds = array<i64: 8, 128>}, {transform_indices = @transform_1, window_bounds = array<i64: 8, 128>}, {transform_indices = @transform_2, window_bounds = array<i64: 8, 128>}, {transform_indices = @transform_3, window_bounds = array<i64: 8, 128>}, {transform_indices = @transform_4, window_bounds = array<i64: 8, 128>}]} {
    %c0_i32 = arith.constant 0 : i32
    %0 = arith.cmpi eq, %arg1, %c0_i32 : i32
    %1 = arith.extui %0 : i1 to i32
    %c0_i32_0 = arith.constant 0 : i32
    %2 = arith.cmpi ne, %1, %c0_i32_0 : i32
    scf.if %2 {
      %cst_16 = arith.constant 0.000000e+00 : f32
      %28 = vector.broadcast %cst_16 : f32 to vector<8x128xf32>
      %c0_17 = arith.constant 0 : index
      %c0_18 = arith.constant 0 : index
      %29 = vector.load %arg7[%c0_17, %c0_18] : memref<8x128xf32, #tpu.memory_space<vmem>>, vector<8x128xf32>
      tpu.vector_store %arg7[%c0_17, %c0_18], %28 {strides = array<i32>} : memref<8x128xf32, #tpu.memory_space<vmem>>, vector<8x128xf32>,
    } else {
    }
    %c0 = arith.constant 0 : index
    %c0_1 = arith.constant 0 : index
    %3 = vector.load %arg2[%c0, %c0_1] : memref<8x128xf32, #tpu.memory_space<vmem>>, vector<8x128xf32>
    %c0_2 = arith.constant 0 : index
    %c0_3 = arith.constant 0 : index
    %4 = vector.load %arg3[%c0_2, %c0_3] : memref<8x128xf32, #tpu.memory_space<vmem>>, vector<8x128xf32>
    %5 = arith.mulf %3, %4 : vector<8x128xf32>
    %c0_4 = arith.constant 0 : index
    %c0_5 = arith.constant 0 : index
    %6 = vector.load %arg5[%c0_4, %c0_5] : memref<8x128xf32, #tpu.memory_space<vmem>>, vector<8x128xf32>
    %7 = arith.mulf %5, %6 : vector<8x128xf32>
    %c0_6 = arith.constant 0 : index
    %c0_7 = arith.constant 0 : index
    %8 = vector.load %arg4[%c0_6, %c0_7] : memref<8x128xf32, #tpu.memory_space<vmem>>, vector<8x128xf32>
    %9 = arith.divf %7, %8 : vector<8x128xf32>
    %c1_i32 = arith.constant 1 : i32
    %10 = arith.muli %arg0, %c1_i32 : i32
    %11 = arith.addi %10, %arg1 : i32
    %c8_i32 = arith.constant 8 : i32
    %12 = arith.muli %11, %c8_i32 : i32
    %13 = tpu.iota {dimensions = array<i32: 0>} : vector<8x128xi32>
    %14 = vector.broadcast %12 : i32 to vector<8x128xi32>
    %15 = arith.addi %14, %13 : vector<8x128xi32>
    %c8_i32_8 = arith.constant 8 : i32
    %16 = vector.broadcast %c8_i32_8 : i32 to vector<8x128xi32>
    %17 = arith.cmpi slt, %15, %16 : vector<8x128xi32>
    %cst = arith.constant 0.000000e+00 : f32
    %18 = vector.broadcast %cst : f32 to vector<8x128xf32>
    %19 = arith.select %17, %9, %18 : vector<8x128xi1>, vector<8x128xf32>
    %c0_9 = arith.constant 0 : index
    %c0_10 = arith.constant 0 : index
    %20 = vector.load %arg7[%c0_9, %c0_10] : memref<8x128xf32, #tpu.memory_space<vmem>>, vector<8x128xf32>
    %21 = vector.shape_cast %19 : vector<8x128xf32> to vector<1x8x128xf32>
    %cst_11 = arith.constant dense<0.000000e+00> : vector<8x128xf32>
    %22 = vector.multi_reduction <add>, %21, %cst_11 [0] : vector<1x8x128xf32> to vector<8x128xf32>
    %23 = arith.addf %20, %22 : vector<8x128xf32>
    %c0_12 = arith.constant 0 : index
    %c0_13 = arith.constant 0 : index
    %24 = vector.load %arg7[%c0_12, %c0_13] : memref<8x128xf32, #tpu.memory_space<vmem>>, vector<8x128xf32>
    tpu.vector_store %arg7[%c0_12, %c0_13], %23 {strides = array<i32>} : memref<8x128xf32, #tpu.memory_space<vmem>>, vector<8x128xf32>,
    %c0_i32_14 = arith.constant 0 : i32
    %25 = arith.cmpi eq, %arg1, %c0_i32_14 : i32
    %26 = arith.extui %25 : i1 to i32
    %c0_i32_15 = arith.constant 0 : i32
    %27 = arith.cmpi ne, %26, %c0_i32_15 : i32
    scf.if %27 {
      %c0_16 = arith.constant 0 : index
      %c0_17 = arith.constant 0 : index
      %28 = vector.load %arg7[%c0_16, %c0_17] : memref<8x128xf32, #tpu.memory_space<vmem>>, vector<8x128xf32>
      %29 = vector.shape_cast %28 : vector<8x128xf32> to vector<1x8x128xf32>
      %cst_18 = arith.constant dense<0.000000e+00> : vector<1xf32>
      %30 = vector.multi_reduction <add>, %29, %cst_18 [1, 2] : vector<1x8x128xf32> to vector<1xf32>
      %31 = vector.shape_cast %30 : vector<1xf32> to vector<1x1x1xf32>
      %32 = vector.extract %31[0, 0, 0] : f32 from vector<1x1x1xf32>
      %33 = vector.broadcast %32 : f32 to vector<8x128xf32>
      %c0_19 = arith.constant 0 : index
      %c0_20 = arith.constant 0 : index
      %34 = vector.load %arg6[%c0_19, %c0_20] : memref<8x128xf32, #tpu.memory_space<vmem>>, vector<8x128xf32>
      tpu.vector_store %arg6[%c0_19, %c0_20], %33 {strides = array<i32>} : memref<8x128xf32, #tpu.memory_space<vmem>>, vector<8x128xf32>,
    } else {
    }
    return
  }
  func.func @transform_0(%arg0: i32, %arg1: i32) -> (i32, i32) {
    %c1_i32 = arith.constant 1 : i32
    %0 = arith.muli %arg0, %c1_i32 : i32
    %1 = arith.addi %0, %arg1 : i32
    %c0_i32 = arith.constant 0 : i32
    %2 = arith.minsi %1, %c0_i32 : i32
    %c0_i32_0 = arith.constant 0 : i32
    %c0_i32_1 = arith.constant 0 : i32
    return %2, %c0_i32_0 : i32, i32
  }
  func.func @transform_1(%arg0: i32, %arg1: i32) -> (i32, i32) {
    %c1_i32 = arith.constant 1 : i32
    %0 = arith.muli %arg0, %c1_i32 : i32
    %1 = arith.addi %0, %arg1 : i32
    %c0_i32 = arith.constant 0 : i32
    %2 = arith.minsi %1, %c0_i32 : i32
    %c0_i32_0 = arith.constant 0 : i32
    %c0_i32_1 = arith.constant 0 : i32
    return %2, %c0_i32_0 : i32, i32
  }
  func.func @transform_2(%arg0: i32, %arg1: i32) -> (i32, i32) {
    %c1_i32 = arith.constant 1 : i32
    %0 = arith.muli %arg0, %c1_i32 : i32
    %1 = arith.addi %0, %arg1 : i32
    %c0_i32 = arith.constant 0 : i32
    %2 = arith.minsi %1, %c0_i32 : i32
    %c0_i32_0 = arith.constant 0 : i32
    %c0_i32_1 = arith.constant 0 : i32
    return %2, %c0_i32_0 : i32, i32
  }
  func.func @transform_3(%arg0: i32, %arg1: i32) -> (i32, i32) {
    %c1_i32 = arith.constant 1 : i32
    %0 = arith.muli %arg0, %c1_i32 : i32
    %1 = arith.addi %0, %arg1 : i32
    %c0_i32 = arith.constant 0 : i32
    %2 = arith.minsi %1, %c0_i32 : i32
    %c0_i32_0 = arith.constant 0 : i32
    %c0_i32_1 = arith.constant 0 : i32
    return %2, %c0_i32_0 : i32, i32
  }
  func.func @transform_4(%arg0: i32, %arg1: i32) -> (i32, i32) {
    %c0_i32 = arith.constant 0 : i32
    %c0_i32_0 = arith.constant 0 : i32
    return %arg0, %c0_i32 : i32, i32
  }
}

</mosaic_0001>

<llo_original>
// kernel: _coulomb_energy.1
$region0: #{_coulomb_energy.1}
  #allocation0 [shape = 'u32[]', space=smem, size = 0x4, offset = 0x4, fixed_abs, tag = 'smem constant byte address 0x4 - core index']
  #allocation1 [shape = 'u32[144,128]{1,0:T(1,128)}', space=vmem, size = 0x12000, scoped, tag = 'internal scratch']
  #allocation2 [shape = 'f32[8,128]{1,0:T(8,128)}', space=vmem, size = 0x1000, scoped, tag = 'scratch operand']
  %s0 = inlined_call_operand.vmem [shape: f32[8,128], index: 0, kind: input, shape index: {}]
  %s1 = inlined_call_operand.vmem [shape: f32[8,128], index: 1, kind: input, shape index: {}]
  %s2 = inlined_call_operand.vmem [shape: f32[8,128], index: 2, kind: input, shape index: {}]
  %s3 = inlined_call_operand.vmem [shape: f32[8,128], index: 3, kind: input, shape index: {}]
  %s4 = inlined_call_operand.vmem [shape: f32[8,128], index: 4, kind: output, shape index: {}]
  %s5 = sld [smem:[#allocation0]]
  $region34: #{_coulomb_energy.1} parent=0
    _
  %s7 = ssub.s32 1, %s5
  %s8 = scalar_select 0, %s7, %s5
  // Predicated region
  $region2: #{_coulomb_energy.1} parent=0 // pred_check
    _
  $region3: #{_coulomb_energy.1} parent=0 // pred_check_branch
    %10 = sbr.rel (0) target = $region5
  $region4: #{_coulomb_energy.1} parent=0 // pred_region
    %s11 = sadd.s32 0, 0
    %p12 = scmp.lt.s32.totalorder %s11, 0
    %s13 = scalar_select %p12, %s11, 0
    %p14 = scmp.lt.s32.totalorder %s13, 0
    %s15 = scalar_select %p14, %s13, 0
    %s16 = smul.addr %s15, 8
    %s17 = scalar_lea.vmem %s0, %s16
    %s18 = sadd.s32 0, 0
    %p19 = scmp.lt.s32.totalorder %s18, 0
    %s20 = scalar_select %p19, %s18, 0
  $region5: #{_coulomb_energy.1} parent=0 // pred_fallthru
    _
  // Predicated region
  $region6: #{_coulomb_energy.1} parent=0 // pred_check
    _
  $region7: #{_coulomb_energy.1} parent=0 // pred_check_branch
    %22 = sbr.rel (0) target = $region9
  $region8: #{_coulomb_energy.1} parent=0 // pred_region
    %s23 = sadd.s32 0, 0
    %p24 = scmp.lt.s32.totalorder %s23, 0
    %s25 = scalar_select %p24, %s23, 0
    %p26 = scmp.lt.s32.totalorder %s25, 0
    %s27 = scalar_select %p26, %s25, 0
    %s28 = smul.addr %s27, 8
    %s29 = scalar_lea.vmem %s1, %s28
    %s30 = sadd.s32 0, 0
    %p31 = scmp.lt.s32.totalorder %s30, 0
    %s32 = scalar_select %p31, %s30, 0
  $region9: #{_coulomb_energy.1} parent=0 // pred_fallthru
    _
  // Predicated region
  $region10: #{_coulomb_energy.1} parent=0 // pred_check
    _
  $region11: #{_coulomb_energy.1} parent=0 // pred_check_branch
    %34 = sbr.rel (0) target = $region13
  $region12: #{_coulomb_energy.1} parent=0 // pred_region
    %s35 = sadd.s32 0, 0
    %p36 = scmp.lt.s32.totalorder %s35, 0
    %s37 = scalar_select %p36, %s35, 0
    %p38 = scmp.lt.s32.totalorder %s37, 0
    %s39 = scalar_select %p38, %s37, 0
    %s40 = smul.addr %s39, 8
    %s41 = scalar_lea.vmem %s2, %s40
    %s42 = sadd.s32 0, 0
    %p43 = scmp.lt.s32.totalorder %s42, 0
    %s44 = scalar_select %p43, %s42, 0
  $region13: #{_coulomb_energy.1} parent=0 // pred_fallthru
    _
  // Predicated region
  $region14: #{_coulomb_energy.1} parent=0 // pred_check
    _
  $region15: #{_coulomb_energy.1} parent=0 // pred_check_branch
    %46 = sbr.rel (0) target = $region17
  $region16: #{_coulomb_energy.1} parent=0 // pred_region
    %s47 = sadd.s32 0, 0
    %p48 = scmp.lt.s32.totalorder %s47, 0
    %s49 = scalar_select %p48, %s47, 0
    %p50 = scmp.lt.s32.totalorder %s49, 0
    %s51 = scalar_select %p50, %s49, 0
    %s52 = smul.addr %s51, 8
    %s53 = scalar_lea.vmem %s3, %s52
    %s54 = sadd.s32 0, 0
    %p55 = scmp.lt.s32.totalorder %s54, 0
    %s56 = scalar_select %p55, %s54, 0
  $region17: #{_coulomb_energy.1} parent=0 // pred_fallthru
    _
  %s57 = sadd.s32 0, 0
  %p58 = scmp.lt.s32.totalorder %s57, 0
  %s59 = scalar_select %p58, %s57, 0
  %p60 = scmp.lt.s32.totalorder %s59, 0
  %s61 = scalar_select %p60, %s59, 0
  %s62 = smul.addr %s61, 8
  %s63 = scalar_lea.vmem %s0, %s62
  %s64 = sadd.s32 0, 0
  %p65 = scmp.lt.s32.totalorder %s64, 0
  %s66 = scalar_select %p65, %s64, 0
  %p67 = scmp.lt.s32.totalorder %s66, 0
  %s68 = scalar_select %p67, %s66, 0
  %s69 = smul.addr %s68, 8
  %s70 = scalar_lea.vmem %s1, %s69
  %s71 = sadd.s32 0, 0
  %p72 = scmp.lt.s32.totalorder %s71, 0
  %s73 = scalar_select %p72, %s71, 0
  %p74 = scmp.lt.s32.totalorder %s73, 0
  %s75 = scalar_select %p74, %s73, 0
  %s76 = smul.addr %s75, 8
  %s77 = scalar_lea.vmem %s2, %s76
  %s78 = sadd.s32 0, 0
  %p79 = scmp.lt.s32.totalorder %s78, 0
  %s80 = scalar_select %p79, %s78, 0
  %p81 = scmp.lt.s32.totalorder %s80, 0
  %s82 = scalar_select %p81, %s80, 0
  %s83 = smul.addr %s82, 8
  %s84 = scalar_lea.vmem %s3, %s83
  %s85 = sadd.s32 0, 0
  %p86 = scmp.lt.s32.totalorder %s85, 0
  %s87 = scalar_select %p86, %s85, 0
  %p88 = scmp.lt.s32.totalorder %s87, 0
  %s89 = scalar_select %p88, %s87, 0
  %s90 = smul.addr %s89, 8
  %s91 = scalar_lea.vmem %s0, %s90
  %s92 = sadd.s32 0, 0
  %p93 = scmp.lt.s32.totalorder %s92, 0
  %s94 = scalar_select %p93, %s92, 0
  %s95 = sadd.s32 0, 0
  %p96 = scmp.lt.s32.totalorder %s95, 0
  %s97 = scalar_select %p96, %s95, 0
  %p98 = scmp.lt.s32.totalorder %s97, 0
  %s99 = scalar_select %p98, %s97, 0
  %s100 = smul.addr %s99, 8
  %s101 = scalar_lea.vmem %s1, %s100
  %s102 = sadd.s32 0, 0
  %p103 = scmp.lt.s32.totalorder %s102, 0
  %s104 = scalar_select %p103, %s102, 0
  %s105 = sadd.s32 0, 0
  %p106 = scmp.lt.s32.totalorder %s105, 0
  %s107 = scalar_select %p106, %s105, 0
  %p108 = scmp.lt.s32.totalorder %s107, 0
  %s109 = scalar_select %p108, %s107, 0
  %s110 = smul.addr %s109, 8
  %s111 = scalar_lea.vmem %s2, %s110
  %s112 = sadd.s32 0, 0
  %p113 = scmp.lt.s32.totalorder %s112, 0
  %s114 = scalar_select %p113, %s112, 0
  %s115 = sadd.s32 0, 0
  %p116 = scmp.lt.s32.totalorder %s115, 0
  %s117 = scalar_select %p116, %s115, 0
  %p118 = scmp.lt.s32.totalorder %s117, 0
  %s119 = scalar_select %p118, %s117, 0
  %s120 = smul.addr %s119, 8
  %s121 = scalar_lea.vmem %s3, %s120
  %s122 = sadd.s32 0, 0
  %p123 = scmp.lt.s32.totalorder %s122, 0
  %s124 = scalar_select %p123, %s122, 0
  %p125 = scmp.eq.s32.totalorder 0, 0
  // Predicated region
  $region18: #{_coulomb_energy.1} parent=0 // pred_check
    %p126 = pneg %p125
  $region19: #{_coulomb_energy.1} parent=0 // pred_check_branch
    %128 = sbr.rel (%p126) target = $region21
  $region20: #{_coulomb_energy.1} parent=0 // pred_region
    %129 = vst [vmem:[#allocation2] sm:$0xff] 0.0
  $region21: #{_coulomb_energy.1} parent=0 // pred_fallthru
    _
  %v130 = vld [vmem:[%s91] sm:$0xff]
  %v131 = vld [vmem:[%s101] sm:$0xff]
  %v132 = vmul.f32 %v130, %v131
  %v133 = vld [vmem:[%s121] sm:$0xff]
  %v134 = vmul.f32 %v132, %v133
  %v135 = vld [vmem:[%s111] sm:$0xff]
  %v136 = vrcp.pop %v135
  %v137 = vmul.f32 %v134, %v136
  %s138 = sadd.s32 0, 0
  %s139 = smul.u32 %s138, 8
  %v140 = vlaneseq
  %v141 = vshrl.u32 %v140, 7
  %v142 = vstv %s139
  %v143 = vadd.s32 %v142, %v141
  %vm144 = vcmp.lt.s32.totalorder %v143, 8
  %v145 = vsel %vm144, %v137, 0.0
  %v146 = vld [vmem:[#allocation2] sm:$0xff]
  %v147 = vadd.f32 %v145, 0.0
  %v148 = vadd.f32 %v146, %v147
  %149 = vst [vmem:[#allocation2] sm:$0xff] %v148
  // Predicated region
  $region22: #{_coulomb_energy.1} parent=0 // pred_check
    %p150 = pneg %p125
  $region23: #{_coulomb_energy.1} parent=0 // pred_check_branch
    %152 = sbr.rel (%p150) target = $region25
  $region24: #{_coulomb_energy.1} parent=0 // pred_region
    %v153 = vld [vmem:[#allocation2] sm:$0xff]
    %154 = vadd.xlane.f32.xlu0 %v153
    %v155 = vpop.xlane.xlu0 %154
    %v156 = vrot.slane %v155, 4
    %v157 = vadd.f32 %v155, %v156
    %v158 = vrot.slane %v157, 2
    %v159 = vadd.f32 %v157, %v158
    %v160 = vrot.slane %v159, 1
    %v161 = vadd.f32 %v159, %v160
    %s162 = vtos %v161
    %v163 = vstv %s162
    %164 = vst [vmem:[%s4] sm:$0xff] %v163
  $region25: #{_coulomb_energy.1} parent=0 // pred_fallthru
    _
  // Predicated region
  $region26: #{_coulomb_energy.1} parent=0 // pred_check
    _
  $region27: #{_coulomb_energy.1} parent=0 // pred_check_branch
    %166 = sbr.rel (0) target = $region29
  $region28: #{_coulomb_energy.1} parent=0 // pred_region
    _
  $region29: #{_coulomb_energy.1} parent=0 // pred_fallthru
    _
  // Predicated region
  $region30: #{_coulomb_energy.1} parent=0 // pred_check
    _
  $region31: #{_coulomb_energy.1} parent=0 // pred_check_branch
    %168 = sbr.rel (0) target = $region33
  $region32: #{_coulomb_energy.1} parent=0 // pred_region
    _
  $region33: #{_coulomb_energy.1} parent=0 // pred_fallthru
    _

</llo_original>
